<compile_context>
chip_gen: v7x
topology: tpu7x:2x2x1
jax: 0.10.0
libtpu: 0.0.40
codegen_flags: <defaults>
</compile_context>

<pallas_src>
import numpy as np
import jax
import jax.numpy as jnp
from jax.experimental import pallas as pl
from jax.experimental.pallas import tpu as pltpu

LANE = 128                      # lane width: M-tile multiple of this
SUBLANE = 8                     # sublane width: Cout / K pad to this
_VMEM_LIMIT = 32 * 1024 * 1024  # explicit scoped-VMEM limit (footprint is tiny)


def _round_up(x, m):
    return ((x + m - 1) // m) * m


# ------------------------------ Pallas kernels -------------------------------
def _conv_stats_kernel(w_ref, x_ref, y_ref, sum_ref, sq_ref):
    """Pass 1: y^T = W @ xcol^T on one M-tile (M on lanes); emit y (bf16) and
    per-tile BN partial sums / sums-of-squares."""
    y = jnp.dot(w_ref[...], x_ref[...],
                preferred_element_type=jnp.float32)            # (Cp, TM) f32
    y_ref[...] = y.astype(y_ref.dtype)                         # bf16 writeback
    # Per-channel partials over the M (lane) axis -> XLU reduce.  Padded M
    # columns are exactly zero (no conv bias, zero-padded xcol), so they add
    # nothing to either sum: no masking / pl.when needed.
    sum_ref[...] = jnp.sum(y, axis=1, keepdims=True).reshape(sum_ref.shape)
    sq_ref[...] = jnp.sum(y * y, axis=1, keepdims=True).reshape(sq_ref.shape)


def _bn_act_kernel(y_ref, scale_ref, shift_ref, o_ref):
    """Pass 2: folded BatchNorm (y*scale + shift) + LeakyReLU(0.1)."""
    y = y_ref[...].astype(jnp.float32)                         # (Cp, TM)
    out = y * scale_ref[...] + shift_ref[...]
    o_ref[...] = jnp.where(out >= 0.0, out, 0.1 * out)


# ---------------------------------- glue --------------------------------------
def im2col_T(x_nhwc, ksize, pad):
    """xcol^T of shape (K, M) with K ordered (ky, kx, cin), M ordered (n, h, w)."""
    N, H, W, C = x_nhwc.shape
    xp = jnp.pad(x_nhwc, ((0, 0), (pad, pad), (pad, pad), (0, 0)))
    cols = []
    for ky in range(ksize):
        for kx in range(ksize):
            cols.append(xp[:, ky:ky + H, kx:kx + W, :])
    xc = jnp.stack(cols, axis=0)                     # (KK, N, H, W, C)
    xc = jnp.transpose(xc, (0, 4, 1, 2, 3))          # (KK, C, N, H, W)
    return xc.reshape(ksize * ksize * C, N * H * W)  # (K, M)


def spectral_sigma(w2d, n_iter=30):
    """Power iteration (like nn.utils.spectral_norm) with deterministic init."""
    def body(_, u):
        v = w2d.T @ u
        v = v / (jnp.linalg.norm(v) + 1e-12)
        u = w2d @ v
        u = u / (jnp.linalg.norm(u) + 1e-12)
        return u

    u0 = jnp.ones((w2d.shape[0],), jnp.float32)
    u0 = u0 / (jnp.linalg.norm(u0) + 1e-12)
    u = jax.lax.fori_loop(0, n_iter, body, u0)
    v = w2d.T @ u
    v = v / (jnp.linalg.norm(v) + 1e-12)
    return u @ (w2d @ v)


def same_block_forward(x_nchw, params, ksize=3, padding=1, eps=1e-5, tile_m=1024):
    w, gamma, beta = params["w"], params["gamma"], params["beta"]
    # NOTE: params["b"] (conv bias) is intentionally NOT applied in the kernel
    # path: BatchNorm with batch statistics cancels it exactly, so the forward
    # output is identical while variance stays well-conditioned.
    N, Cin, H, W = x_nchw.shape
    Cout = w.shape[0]
    K = ksize * ksize * Cin

    # spectral norm: divide conv weight by its largest singular value
    sigma = spectral_sigma(w.reshape(Cout, -1))
    w_sn = w / sigma

    x_nhwc = jnp.transpose(x_nchw, (0, 2, 3, 1))
    xcolT = im2col_T(x_nhwc, ksize, padding)          # (K, M) f32
    M = xcolT.shape[1]

    Cp = _round_up(Cout, SUBLANE)                     # Cout pads to sublanes only
    Kp = _round_up(K, SUBLANE)                        # K pads to sublanes only
    # M is the lane axis: tile must be a multiple of 128; cap so num_tiles >= 2
    # (v7x megacore gets both TensorCores busy via the "parallel" grid axis).
    tm_cap = _round_up(max((M + 1) // 2, LANE), LANE)
    TM = _round_up(min(tile_m, tm_cap), LANE)
    Mp = _round_up(M, TM)
    num_tiles = Mp // TM

    # bf16 MXU operands (f32 accumulation inside the kernel)
    xcolT_p = jnp.pad(xcolT, ((0, Kp - K), (0, Mp - M))).astype(jnp.bfloat16)
    w2d = jnp.transpose(w_sn, (0, 2, 3, 1)).reshape(Cout, K)   # (Cout, K)
    w_p = jnp.pad(w2d, ((0, Cp - Cout), (0, Kp - K))).astype(jnp.bfloat16)
    gamma_p = jnp.pad(gamma.astype(jnp.float32), (0, Cp - Cout))
    beta_p = jnp.pad(beta.astype(jnp.float32), (0, Cp - Cout))

    cparams = pltpu.CompilerParams(
        dimension_semantics=("parallel",),
        vmem_limit_bytes=_VMEM_LIMIT)

    w_spec = pl.BlockSpec((Cp, Kp), lambda i: (0, 0))
    x_spec = pl.BlockSpec((Kp, TM), lambda i: (0, i))
    y_spec = pl.BlockSpec((Cp, TM), lambda i: (0, i))
    stat_spec = pl.BlockSpec((1, Cp, 1), lambda i: (i, 0, 0))

    # ---- pass 1: conv GEMM (transposed layout) + per-tile BN partials --------
    y_bf16, psum, psq = pl.pallas_call(
        _conv_stats_kernel,
        out_shape=(jax.ShapeDtypeStruct((Cp, Mp), jnp.bfloat16),
                   jax.ShapeDtypeStruct((num_tiles, Cp, 1), jnp.float32),
                   jax.ShapeDtypeStruct((num_tiles, Cp, 1), jnp.float32)),
        grid=(num_tiles,),
        in_specs=[w_spec, x_spec],
        out_specs=(y_spec, stat_spec, stat_spec),
        compiler_params=cparams,
    )(w_p, xcolT_p)

    # tiny global combine over per-tile partials -> folded BN scale/shift
    sum_c = jnp.sum(psum[:, :, 0], axis=0)            # (Cp,)
    sq_c = jnp.sum(psq[:, :, 0], axis=0)
    mean = sum_c / M
    var = jnp.maximum(sq_c / M - mean * mean, 0.0)    # biased variance (BN train)
    scale = gamma_p * jax.lax.rsqrt(var + eps)
    shift = beta_p - mean * scale
    scale = scale.reshape(Cp, 1)
    shift = shift.reshape(Cp, 1)

    # ---- pass 2: elementwise folded-BN + LeakyReLU, lane-dense output --------
    vec_spec = pl.BlockSpec((Cp, 1), lambda i: (0, 0))
    out_t = pl.pallas_call(
        _bn_act_kernel,
        out_shape=jax.ShapeDtypeStruct((Cp, Mp), jnp.float32),
        grid=(num_tiles,),
        in_specs=[y_spec, vec_spec, vec_spec],
        out_specs=y_spec,
        compiler_params=cparams,
    )(y_bf16, scale, shift)

    out = out_t[:Cout, :M].reshape(Cout, N, H, W)
    return jnp.transpose(out, (1, 0, 2, 3))           # back to NCHW


# ------------------------- pure-JAX reference check ---------------------------
def same_block_reference(x_nchw, params, ksize=3, padding=1, eps=1e-5):
    w, b, gamma, beta = params["w"], params["b"], params["gamma"], params["beta"]
    sigma = spectral_sigma(w.reshape(w.shape[0], -1))
    w_sn = w / sigma
    y = jax.lax.conv_general_dilated(
        x_nchw, w_sn, window_strides=(1, 1),
        padding=[(padding, padding), (padding, padding)],
        dimension_numbers=("NCHW", "OIHW", "NCHW"))
    y = y + b[None, :, None, None]
    mean = jnp.mean(y, axis=(0, 2, 3), keepdims=True)
    var = jnp.mean(jnp.square(y - mean), axis=(0, 2, 3), keepdims=True)
    y = (y - mean) * jax.lax.rsqrt(var + eps)
    y = y * gamma[None, :, None, None] + beta[None, :, None, None]
    return jnp.where(y >= 0.0, y, 0.1 * y)


if __name__ == "__main__":
    key = jax.random.PRNGKey(0)
    N, Cin, Cout, H, W = 2, 4, 8, 16, 16
    k1, k2, k3, k4, k5 = jax.random.split(key, 5)

    x = jax.random.normal(k1, (N, Cin, H, W), jnp.float32)
    params = dict(
        w=jax.random.normal(k2, (Cout, Cin, 3, 3), jnp.float32) * 0.1,
        b=jax.random.normal(k3, (Cout,), jnp.float32) * 0.1,
        gamma=1.0 + 0.1 * jax.random.normal(k4, (Cout,), jnp.float32),
        beta=0.1 * jax.random.normal(k5, (Cout,), jnp.float32),
    )

    out = same_block_forward(x, params)
    out = jax.block_until_ready(out)
    assert out.shape == (N, Cout, H, W)

    ref = same_block_reference(x, params)
    np.testing.assert_allclose(np.asarray(out), np.asarray(ref),
                               rtol=2e-2, atol=2e-2)
    print("KERNEL_OK")
</pallas_src>

<mosaic_0001>
module attributes {stable_mosaic.version = 11 : i64} {
  func.func @_conv_stats_kernel(%arg0: i32, %arg1: memref<8x40xbf16, #tpu.memory_space<vmem>>, %arg2: memref<40x256xbf16, #tpu.memory_space<vmem>>, %arg3: memref<8x256xbf16, #tpu.memory_space<vmem>>, %arg4: memref<1x8x1xf32, #tpu.memory_space<vmem>>, %arg5: memref<1x8x1xf32, #tpu.memory_space<vmem>>) attributes {dimension_semantics = [#tpu.dimension_semantics<parallel>], iteration_bounds = array<i64: 2>, scalar_prefetch = 0 : i64, scratch_operands = 0 : i64, tpu.core_type = #tpu.core_type<tc>, window_params = [{pipeline_mode = #tpu.pipeline_mode<synchronous>, transform_indices = @transform_0, window_bounds = array<i64: 8, 40>}, {transform_indices = @transform_1, window_bounds = array<i64: 40, 256>}, {transform_indices = @transform_2, window_bounds = array<i64: 8, 256>}, {transform_indices = @transform_3, window_bounds = array<i64: 1, 8, 1>}, {transform_indices = @transform_4, window_bounds = array<i64: 1, 8, 1>}]} {
    %c0 = arith.constant 0 : index
    %c0_0 = arith.constant 0 : index
    %0 = vector.load %arg1[%c0, %c0_0] : memref<8x40xbf16, #tpu.memory_space<vmem>>, vector<8x40xbf16>
    %c0_1 = arith.constant 0 : index
    %c0_2 = arith.constant 0 : index
    %1 = vector.load %arg2[%c0_1, %c0_2] : memref<40x256xbf16, #tpu.memory_space<vmem>>, vector<40x256xbf16>
    %cst = arith.constant dense<0.000000e+00> : vector<8x256xf32>
    %2 = tpu.matmul %0, %1, %cst {dimension_numbers = #tpu.dot_dimension_numbers<[1], [0], [0], [1], [0, 0, 1, 1], [], []>} : vector<8x40xbf16>, vector<40x256xbf16>, vector<8x256xf32> -> vector<8x256xf32>
    %3 = arith.truncf %2 : vector<8x256xf32> to vector<8x256xbf16>
    %c0_3 = arith.constant 0 : index
    %c0_4 = arith.constant 0 : index
    %4 = vector.load %arg3[%c0_3, %c0_4] : memref<8x256xbf16, #tpu.memory_space<vmem>>, vector<8x256xbf16>
    tpu.vector_store %arg3[%c0_3, %c0_4], %3 {strides = array<i32>} : memref<8x256xbf16, #tpu.memory_space<vmem>>, vector<8x256xbf16>,
    %cst_5 = arith.constant dense<0.000000e+00> : vector<8xf32>
    %5 = vector.multi_reduction <add>, %2, %cst_5 [1] : vector<8x256xf32> to vector<8xf32>
    %6 = vector.shape_cast %5 : vector<8xf32> to vector<8x1xf32>
    %7 = vector.shape_cast %6 : vector<8x1xf32> to vector<1x8x1xf32>
    %c0_6 = arith.constant 0 : index
    %c0_7 = arith.constant 0 : index
    %c0_8 = arith.constant 0 : index
    %8 = vector.load %arg4[%c0_6, %c0_7, %c0_8] : memref<1x8x1xf32, #tpu.memory_space<vmem>>, vector<1x8x1xf32>
    tpu.vector_store %arg4[%c0_6, %c0_7, %c0_8], %7 {strides = array<i32>} : memref<1x8x1xf32, #tpu.memory_space<vmem>>, vector<1x8x1xf32>,
    %9 = arith.mulf %2, %2 : vector<8x256xf32>
    %cst_9 = arith.constant dense<0.000000e+00> : vector<8xf32>
    %10 = vector.multi_reduction <add>, %9, %cst_9 [1] : vector<8x256xf32> to vector<8xf32>
    %11 = vector.shape_cast %10 : vector<8xf32> to vector<8x1xf32>
    %12 = vector.shape_cast %11 : vector<8x1xf32> to vector<1x8x1xf32>
    %c0_10 = arith.constant 0 : index
    %c0_11 = arith.constant 0 : index
    %c0_12 = arith.constant 0 : index
    %13 = vector.load %arg5[%c0_10, %c0_11, %c0_12] : memref<1x8x1xf32, #tpu.memory_space<vmem>>, vector<1x8x1xf32>
    tpu.vector_store %arg5[%c0_10, %c0_11, %c0_12], %12 {strides = array<i32>} : memref<1x8x1xf32, #tpu.memory_space<vmem>>, vector<1x8x1xf32>,
    return
  }
  func.func @transform_0(%arg0: i32) -> (i32, i32) {
    %c0_i32 = arith.constant 0 : i32
    %c0_i32_0 = arith.constant 0 : i32
    %c0_i32_1 = arith.constant 0 : i32
    return %c0_i32, %c0_i32_0 : i32, i32
  }
  func.func @transform_1(%arg0: i32) -> (i32, i32) {
    %c0_i32 = arith.constant 0 : i32
    %c0_i32_0 = arith.constant 0 : i32
    return %c0_i32, %arg0 : i32, i32
  }
  func.func @transform_2(%arg0: i32) -> (i32, i32) {
    %c0_i32 = arith.constant 0 : i32
    %c0_i32_0 = arith.constant 0 : i32
    return %c0_i32, %arg0 : i32, i32
  }
  func.func @transform_3(%arg0: i32) -> (i32, i32, i32) {
    %c0_i32 = arith.constant 0 : i32
    %c0_i32_0 = arith.constant 0 : i32
    %c0_i32_1 = arith.constant 0 : i32
    return %arg0, %c0_i32, %c0_i32_0 : i32, i32, i32
  }
  func.func @transform_4(%arg0: i32) -> (i32, i32, i32) {
    %c0_i32 = arith.constant 0 : i32
    %c0_i32_0 = arith.constant 0 : i32
    %c0_i32_1 = arith.constant 0 : i32
    return %arg0, %c0_i32, %c0_i32_0 : i32, i32, i32
  }
}

</mosaic_0001>

<llo_original>
// kernel: tpu_custom_call.1
$region0: #{tpu_custom_call.1}
  #allocation0 [shape = 'u32[]', space=smem, size = 0x4, offset = 0x4, fixed_abs, tag = 'smem constant byte address 0x4 - core index']
  #allocation1 [shape = 'u32[144,128]{1,0:T(1,128)}', space=vmem, size = 0x12000, scoped, tag = 'internal scratch']
  %s0 = inlined_call_operand.hbm [shape: bf16[8,40], index: 0, kind: input, shape index: {}]
  %s1 = inlined_call_operand.hbm [shape: bf16[40,512], index: 1, kind: input, shape index: {}]
  %s2 = inlined_call_operand.hbm [shape: bf16[8,512], index: 2, kind: output, shape index: {0}]
  %s3 = inlined_call_operand.vmem [shape: f32[2,8,1], index: 3, kind: output, shape index: {1}]
  %s4 = inlined_call_operand.vmem [shape: f32[2,8,1], index: 4, kind: output, shape index: {2}]
  %5 = xla_tuple %s2, %s3, %s4
  %s6 = sld [smem:[#allocation0]]
  $region65: #{tpu_custom_call.1} parent=0
    _
  %s8 = ssub.s32 1, %s6
  %s9 = scalar_select 0, %s8, %s6
  $region1: #{tpu_custom_call.1} parent=0
    #allocation2 [shape = 'u8[2048]{0}', space=vmem, size = 0x800, scoped, tag = 'input window, operand 0, single buffered']
    #allocation3 [shape = 's32[2]{0}', space=sflag, size = 0x8, scoped, tag = 'scoped memory for tpu_custom_call.1']
    #allocation4 [shape = 's32[2]{0}', space=sflag, size = 0x8, scoped, tag = 'scoped memory for tpu_custom_call.1']
    #allocation5 [shape = 'u8[40960]{0}', space=vmem, size = 0xa000, scoped, tag = 'input window, operand 1']
    #allocation6 [shape = 's32[2]{0}', space=sflag, size = 0x8, scoped, tag = 'scoped memory for tpu_custom_call.1']
    #allocation7 [shape = 'u8[8192]{0}', space=vmem, size = 0x2000, scoped, tag = 'output window, operand 0']
    %10 = vsyncpa [#allocation3], 0
    %11 = vsyncpa [#allocation6], 0
    %s12 = scalar_lea.sflag [#allocation6], 1
    %13 = vsyncpa %s12, 0
    %14 = vsyncpa [#allocation4], 0
    %s15 = scalar_lea.sflag [#allocation4], 1
    %16 = vsyncpa %s15, 0
    loop: start=0, step=1, limit=4
    $region2: #{tpu_custom_call.1} parent=1 // loop_pre_header
      _
    $region3: #{tpu_custom_call.1} parent=1 // loop_header
      %s18 = sphi 0, %s22
      %p19 = scmp.ge.s32.totalorder %s18, 4
      %s26 = sphi 0, %s26
      %s28 = sphi 0, %s26
      %s29 = sphi 0, %s28
      %s43 = sphi 0, %s29
      %s49 = sphi 0, %s51
      %s52 = sphi 0, %s49
      %s53 = sphi 0, %s52
      %s69 = sphi 0, %s53
      %s75 = sphi 0, %s77
      %s78 = sphi 0, %s75
      %s79 = sphi 0, %s78
      %s95 = sphi 0, %s79
      %s101 = sphi 0, %s103
      %s104 = sphi 0, %s101
      %s105 = sphi 0, %s104
      %s121 = sphi 0, %s105
      %s127 = sphi 0, %s129
      %s130 = sphi 0, %s127
      %s131 = sphi 0, %s130
      %s147 = sphi 0, %s131
    $region4: #{tpu_custom_call.1} parent=1 // loop_header_branch
      %21 = sbr.rel (%p19) target = $region8
    $region5: #{tpu_custom_call.1} parent=1 // loop_body
      %s23 = ssub.s32 %s18, 1
      %s24 = ssub.s32 %s18, 2
      %s25 = sadd.s32 %s18, 1
      %s27 = sadd.s32 %s26, 1
      %p30 = scmp.eq.s32.totalorder %s18, 1
      %p31 = scmp.ne.s32.totalorder %s26, %s28
      %p32 = scmp.eq.s32.totalorder %s18, 0
      %p33 = por %p31, %p32
      %p34 = scmp.ne.s32.totalorder %s26, %s28
      %p35 = scmp.eq.s32.totalorder %s23, 1
      %p36 = por %p34, %p35
      %p37 = scmp.ne.s32.totalorder %s28, %s29
      %p38 = scmp.eq.s32.totalorder %s23, 0
      %p39 = por %p37, %p38
      %p40 = scmp.ne.s32.totalorder %s28, %s29
      %p41 = scmp.eq.s32.totalorder %s24, 1
      %p42 = por %p40, %p41
      %p44 = scmp.ne.s32.totalorder %s29, %s43
      %p45 = scmp.eq.s32.totalorder %s24, 0
      %p46 = por %p44, %p45
      %s47 = ssub.s32 %s18, %s25
      %p48 = scmp.eq.s32.totalorder %s47, 0
      %s50 = sadd.s32 %s49, 1
      %s51 = scalar_select %p48, %s49, %s50
      %p54 = pneg %p48
      %p55 = scmp.eq.s32.totalorder %s18, 1
      %p56 = por %p54, %p55
      %p57 = scmp.ne.s32.totalorder %s49, %s52
      %p58 = scmp.eq.s32.totalorder %s18, 0
      %p59 = por %p57, %p58
      %p60 = scmp.ne.s32.totalorder %s49, %s52
      %p61 = scmp.eq.s32.totalorder %s23, 1
      %p62 = por %p60, %p61
      %p63 = scmp.ne.s32.totalorder %s52, %s53
      %p64 = scmp.eq.s32.totalorder %s23, 0
      %p65 = por %p63, %p64
      %p66 = scmp.ne.s32.totalorder %s52, %s53
      %p67 = scmp.eq.s32.totalorder %s24, 1
      %p68 = por %p66, %p67
      %p70 = scmp.ne.s32.totalorder %s53, %s69
      %p71 = scmp.eq.s32.totalorder %s24, 0
      %p72 = por %p70, %p71
      %s73 = ssub.s32 %s18, %s25
      %p74 = scmp.eq.s32.totalorder %s73, 0
      %s76 = sadd.s32 %s75, 1
      %s77 = scalar_select %p74, %s75, %s76
      %p80 = pneg %p74
      %p81 = scmp.eq.s32.totalorder %s18, 1
      %p82 = por %p80, %p81
      %p83 = scmp.ne.s32.totalorder %s75, %s78
      %p84 = scmp.eq.s32.totalorder %s18, 0
      %p85 = por %p83, %p84
      %p86 = scmp.ne.s32.totalorder %s75, %s78
      %p87 = scmp.eq.s32.totalorder %s23, 1
      %p88 = por %p86, %p87
      %p89 = scmp.ne.s32.totalorder %s78, %s79
      %p90 = scmp.eq.s32.totalorder %s23, 0
      %p91 = por %p89, %p90
      %p92 = scmp.ne.s32.totalorder %s78, %s79
      %p93 = scmp.eq.s32.totalorder %s24, 1
      %p94 = por %p92, %p93
      %p96 = scmp.ne.s32.totalorder %s79, %s95
      %p97 = scmp.eq.s32.totalorder %s24, 0
      %p98 = por %p96, %p97
      %s99 = ssub.s32 %s18, %s25
      %p100 = scmp.eq.s32.totalorder %s99, 0
      %s102 = sadd.s32 %s101, 1
      %s103 = scalar_select %p100, %s101, %s102
      %p106 = pneg %p100
      %p107 = scmp.eq.s32.totalorder %s18, 1
      %p108 = por %p106, %p107
      %p109 = scmp.ne.s32.totalorder %s101, %s104
      %p110 = scmp.eq.s32.totalorder %s18, 0
      %p111 = por %p109, %p110
      %p112 = scmp.ne.s32.totalorder %s101, %s104
      %p113 = scmp.eq.s32.totalorder %s23, 1
      %p114 = por %p112, %p113
      %p115 = scmp.ne.s32.totalorder %s104, %s105
      %p116 = scmp.eq.s32.totalorder %s23, 0
      %p117 = por %p115, %p116
      %p118 = scmp.ne.s32.totalorder %s104, %s105
      %p119 = scmp.eq.s32.totalorder %s24, 1
      %p120 = por %p118, %p119
      %p122 = scmp.ne.s32.totalorder %s105, %s121
      %p123 = scmp.eq.s32.totalorder %s24, 0
      %p124 = por %p122, %p123
      %s125 = ssub.s32 %s18, %s25
      %p126 = scmp.eq.s32.totalorder %s125, 0
      %s128 = sadd.s32 %s127, 1
      %s129 = scalar_select %p126, %s127, %s128
      %p132 = pneg %p126
      %p133 = scmp.eq.s32.totalorder %s18, 1
      %p134 = por %p132, %p133
      %p135 = scmp.ne.s32.totalorder %s127, %s130
      %p136 = scmp.eq.s32.totalorder %s18, 0
      %p137 = por %p135, %p136
      %p138 = scmp.ne.s32.totalorder %s127, %s130
      %p139 = scmp.eq.s32.totalorder %s23, 1
      %p140 = por %p138, %p139
      %p141 = scmp.ne.s32.totalorder %s130, %s131
      %p142 = scmp.eq.s32.totalorder %s23, 0
      %p143 = por %p141, %p142
      %p144 = scmp.ne.s32.totalorder %s130, %s131
      %p145 = scmp.eq.s32.totalorder %s24, 1
      %p146 = por %p144, %p145
      %p148 = scmp.ne.s32.totalorder %s131, %s147
      %p149 = scmp.eq.s32.totalorder %s24, 0
      %p150 = por %p148, %p149
      %p151 = scmp.le.s32.totalorder 1, %s18
      %p152 = scmp.lt.s32.totalorder %s18, 3
      %p153 = pnand %p151, %p152
      %p154 = pneg %p153
      // Predicated region
      $region9: #{tpu_custom_call.1} parent=5 // pred_check
        _
      $region10: #{tpu_custom_call.1} parent=5 // pred_check_branch
        %156 = sbr.rel (%p153) target = $region12
      $region11: #{tpu_custom_call.1} parent=5 // pred_region
        %s157 = ssub.s32 %s18, 1
        // Predicated region
        $region13: #{tpu_custom_call.1} parent=11 // pred_check
          %p158 = pneg %p39
        $region14: #{tpu_custom_call.1} parent=11 // pred_check_branch
          %160 = sbr.rel (%p158) target = $region16
        $region15: #{tpu_custom_call.1} parent=11 // pred_region
          %s162 = ssub.s32 64, 64
          %163 = vsyncadd [#allocation3], %s162
          %s165 = sshll.u32 [#allocation2], 4
          %s166 = int_to_ptr.vmem [resolvable:$true] %s165
          %168 = dma.hbm_to_vmem [thread:$0]  %s0, 64, %s166, [#allocation3]
        $region16: #{tpu_custom_call.1} parent=11 // pred_fallthru
          _
      $region12: #{tpu_custom_call.1} parent=5 // pred_fallthru
        _
      %p169 = scmp.lt.s32.totalorder %s18, 2
      // Predicated region
      $region17: #{tpu_custom_call.1} parent=5 // pred_check
        %p170 = pneg %p169
      $region18: #{tpu_custom_call.1} parent=5 // pred_check_branch
        %172 = sbr.rel (%p170) target = $region20
      $region19: #{tpu_custom_call.1} parent=5 // pred_region
        // Predicated region
        $region21: #{tpu_custom_call.1} parent=19 // pred_check
          %p173 = pneg %p59
        $region22: #{tpu_custom_call.1} parent=19 // pred_check_branch
          %175 = sbr.rel (%p173) target = $region24
        $region23: #{tpu_custom_call.1} parent=19 // pred_region
          %s176 = sand.u32 %s49, 1
          %s177 = scalar_lea.sflag [#allocation6], %s176
          %s178 = sand.u32 %s49, 1
          %s179 = smul.addr %s178, 40
          %s180 = scalar_lea.vmem [#allocation5], %s179
          %s181 = smul.u32 2, %s18
          %s183 = ssub.s32 640, 640
          %184 = vsyncadd %s177, %s183
          %s185 = smul.addr %s181, 64
          %s186 = scalar_lea.hbm %s1, %s185
          %s187 = sshll.u32 %s180, 4
          %s188 = int_to_ptr.vmem [resolvable:$true] %s187
          %193 = dma.hbm_to_vmem [thread:$0]  %s186, 640, %s188, %s177, 256, 128, 8
        $region24: #{tpu_custom_call.1} parent=19 // pred_fallthru
          _
      $region20: #{tpu_custom_call.1} parent=5 // pred_fallthru
        _
      %p194 = scmp.le.s32.totalorder 1, %s18
      %p195 = scmp.lt.s32.totalorder %s18, 3
      %p196 = pnand %p194, %p195
      %p197 = pneg %p196
      // Predicated region
      $region25: #{tpu_custom_call.1} parent=5 // pred_check
        _
      $region26: #{tpu_custom_call.1} parent=5 // pred_check_branch
        %199 = sbr.rel (%p196) target = $region28
      $region27: #{tpu_custom_call.1} parent=5 // pred_region
        %s200 = ssub.s32 %s18, 1
        // Predicated region
        $region29: #{tpu_custom_call.1} parent=27 // pred_check
          %p201 = pneg %p39
        $region30: #{tpu_custom_call.1} parent=27 // pred_check_branch
          %203 = sbr.rel (%p201) target = $region32
        $region31: #{tpu_custom_call.1} parent=27 // pred_region
          %204 = dma.done [#allocation3], 64
        $region32: #{tpu_custom_call.1} parent=27 // pred_fallthru
          _
        %s205 = sand.u32 %s52, 1
        %s206 = scalar_lea.sflag [#allocation6], %s205
        %s207 = sand.u32 %s52, 1
        %s208 = smul.addr %s207, 40
        %s209 = scalar_lea.vmem [#allocation5], %s208
        // Predicated region
        $region33: #{tpu_custom_call.1} parent=27 // pred_check
          %p210 = pneg %p65
        $region34: #{tpu_custom_call.1} parent=27 // pred_check_branch
          %212 = sbr.rel (%p210) target = $region36
        $region35: #{tpu_custom_call.1} parent=27 // pred_region
          %213 = dma.done %s206, 640
        $region36: #{tpu_custom_call.1} parent=27 // pred_fallthru
          _
        %p214 = pneg %p39
        %p215 = pneg %p36
        %s216 = sand.u32 %s52, 1
        %s217 = scalar_lea.sflag [#allocation6], %s216
        %s218 = sand.u32 %s52, 1
        %s219 = smul.addr %s218, 40
        %s220 = scalar_lea.vmem [#allocation5], %s219
        %p221 = pneg %p65
        %p222 = pneg %p62
        %p223 = pneg %p91
        %p224 = pneg %p88
        %s225 = sand.u32 %s78, 1
        %s226 = scalar_lea.sflag [#allocation4], %s225
        %s227 = sand.u32 %s78, 1
        %s228 = smul.addr %s227, 8
        %s229 = scalar_lea.vmem [#allocation7], %s228
        %p230 = pneg %p117
        %p231 = pneg %p114
        %p232 = scmp.lt.s32.totalorder %s23, 1
        %s233 = scalar_select %p232, %s23, 1
        %s234 = smul.addr %s233, 8
        %s235 = scalar_lea.vmem %s3, %s234
        %p236 = pneg %p143
        %p237 = pneg %p140
        %p238 = scmp.lt.s32.totalorder %s23, 1
        %s239 = scalar_select %p238, %s23, 1
        %s240 = smul.addr %s239, 8
        %s241 = scalar_lea.vmem %s4, %s240
        %s242 = smul.u32 2, %s23
        %s243 = smul.u32 2, %s23
        %p244 = scmp.lt.s32.totalorder %s23, 1
        %s245 = scalar_select %p244, %s23, 1
        %s246 = smul.addr %s245, 8
        %s247 = scalar_lea.vmem %s3, %s246
        %p248 = scmp.lt.s32.totalorder %s23, 1
        %s249 = scalar_select %p248, %s23, 1
        %s250 = smul.addr %s249, 8
        %s251 = scalar_lea.vmem %s4, %s250
        %v253 = vld [vmem:[#allocation2] sm:$0xf]
        %v254 = vld [vmem:[%s209] sm:$0xff]
        %v255 = vld [vmem:[%s209 + $0x8] sm:$0xff]
        %v256 = vld [vmem:[%s209 + $0x10] sm:$0xff]
        %v257 = vld [vmem:[%s209 + $0x18] sm:$0xff]
        %v258 = vld [vmem:[%s209 + $0x20] sm:$0xff]
        %v264 = vunpack.c.l.b16 %v254
        %v265 = vunpack.c.h.b16 %v254
        %v266 = vunpack.c.l.b16 %v255
        %v267 = vunpack.c.h.b16 %v255
        %v268 = vunpack.c.l.b16 %v256
        %v269 = vunpack.c.h.b16 %v256
        %v270 = vunpack.c.l.b16 %v257
        %v271 = vunpack.c.h.b16 %v257
        %v272 = vunpack.c.l.b16 %v258
        %v273 = vunpack.c.h.b16 %v258
        %v274 = vpack.c.b16 %v266, %v264
        %v275 = vpack.c.b16 %v267, %v265
        %v276 = vpack.c.b16 %v270, %v268
        %v277 = vpack.c.b16 %v271, %v269
        %v278 = vpack.c.b16 %v272, %v272
        %v279 = vpack.c.b16 %v273, %v273
        %vm284 = vcmask 326656
        %v286 = vsel %vm284, %v253, 0
        %vm288 = vcmask 1043456
        %v290 = vsel %vm288, %v278, 0
        %v293 = vsel %vm288, %v279, 0
        %295 = vmatprep.subr.bf16.mxu0 %v275
        %296 = vmatpush1.bf16.msra.mxu0 %v274
        %297 = vmatprep.subr.bf16.mxu0 %v277
        %298 = vmatpush1.bf16.msra.mxu0 %v276
        %299 = vmatprep.subr.bf16.mxu0 %v293
        %300 = vmatpush1.bf16.msra.mxu0 %v290
        %301 = vmatprep.subr.bf16.mxu0 0
        %302 = vmatpush1.bf16.msra.mxu0 0
        %303 = vmatprep.subr.bf16.mxu0 0
        %304 = vmatpush1.bf16.msra.mxu0 0
        %305 = vmatprep.subr.bf16.mxu0 0
        %306 = vmatpush1.bf16.msra.mxu0 0
        %307 = vmatprep.subr.bf16.mxu0 0
        %308 = vmatpush1.bf16.msra.mxu0 0
        %309 = vmatprep.subr.bf16.mxu0 0
        %310 = vmatpush1.bf16.msra.mxu0 0
        %311 = vmatprep.subr.bf16.mxu0 0
        %312 = vmatpush1.bf16.msra.mxu0 0
        %313 = vmatprep.subr.bf16.mxu0 0
        %314 = vmatpush1.bf16.msra.mxu0 0
        %315 = vmatprep.subr.bf16.mxu0 0
        %316 = vmatpush1.bf16.msra.mxu0 0
        %317 = vmatprep.subr.bf16.mxu0 0
        %318 = vmatpush1.bf16.msra.mxu0 0
        %319 = vmatprep.subr.bf16.mxu0 0
        %320 = vmatpush1.bf16.msra.mxu0 0
        %321 = vmatprep.subr.bf16.mxu0 0
        %322 = vmatpush1.bf16.msra.mxu0 0
        %323 = vmatprep.subr.bf16.mxu0 0
        %324 = vmatpush1.bf16.msra.mxu0 0
        %325 = vmatprep.subr.bf16.mxu0 0
        %326 = vmatpush1.bf16.msra.mxu0 0
        %327 = vmatprep.mubr.bf16.mxu0 0
        %328 = vmatmul.mubr.bf16.gmra.mrb[0].mxu0 %v286
        %v329 = vpop.f32.mrb[0].mxu0
        %v330 = vadd.f32 0.0, %v329
        %v331 = vpop.f32.mrb[0].mxu0
        %v332 = vadd.f32 0.0, %v331
        %v333 = vpop.f32.mrb[0].mxu0
        %v334 = vpop.f32.mrb[0].mxu0
        %335 = vdwg.mxu0
        %v336 = vpack.c.bf16 %v330, %v330
        %v337 = vpack.c.bf16 %v332, %v332
        %v340 = vunpack.c.l.b16 %v336
        %v341 = vunpack.c.l.b16 %v337
        %v342 = vpack.c.b16 %v341, %v340
        %344 = vst [vmem:[%s229] sm:$0xff] %v342
        %v345 = vadd.f32 %v330, %v332
        %346 = vadd.xlane.f32.xlu0 %v345
        %v347 = vpop.xlane.xlu0 %346
        %vm348 = vcmask 7168
        %349 = vst.msk [vmem:[%s247] sm:$0xff] %vm348, %v347
        %v350 = vmul.f32 %v330, %v330
        %v351 = vmul.f32 %v332, %v332
        %v352 = vadd.f32 %v350, %v351
        %353 = vadd.xlane.f32.xlu0 %v352
        %v354 = vpop.xlane.xlu0 %353
        %355 = vst.msk [vmem:[%s251] sm:$0xff] %vm348, %v354
        %s356 = sand.u32 %s78, 1
        %s357 = scalar_lea.sflag [#allocation4], %s356
        %s358 = sand.u32 %s78, 1
        %s359 = smul.addr %s358, 8
        %s360 = scalar_lea.vmem [#allocation7], %s359
        %p361 = scmp.lt.s32.totalorder %s23, 1
        %s362 = scalar_select %p361, %s23, 1
        %s363 = smul.addr %s362, 8
        %s364 = scalar_lea.vmem %s3, %s363
        %p365 = scmp.lt.s32.totalorder %s23, 1
        %s366 = scalar_select %p365, %s23, 1
        %s367 = smul.addr %s366, 8
        %s368 = scalar_lea.vmem %s4, %s367
        // Predicated region
        $region37: #{tpu_custom_call.1} parent=27 // pred_check
          %p369 = pneg %p88
        $region38: #{tpu_custom_call.1} parent=27 // pred_check_branch
          %371 = sbr.rel (%p369) target = $region40
        $region39: #{tpu_custom_call.1} parent=27 // pred_region
          %s372 = smul.u32 2, %s23
          %s374 = ssub.s32 128, 128
          %375 = vsyncadd %s357, %s374
          %s376 = smul.addr %s372, 64
          %s377 = scalar_lea.hbm %s2, %s376
          %s379 = sshll.u32 %s360, 4
          %s380 = int_to_ptr.vmem [resolvable:$true] %s379
          %382 = dma.vmem_to_hbm [thread:$0]  %s380, 128, %s377, %s357
        $region40: #{tpu_custom_call.1} parent=27 // pred_fallthru
          _
        // Predicated region
        $region41: #{tpu_custom_call.1} parent=27 // pred_check
          %p383 = pneg %p114
        $region42: #{tpu_custom_call.1} parent=27 // pred_check_branch
          %385 = sbr.rel (%p383) target = $region44
        $region43: #{tpu_custom_call.1} parent=27 // pred_region
          _
        $region44: #{tpu_custom_call.1} parent=27 // pred_fallthru
          _
        // Predicated region
        $region45: #{tpu_custom_call.1} parent=27 // pred_check
          %p386 = pneg %p140
        $region46: #{tpu_custom_call.1} parent=27 // pred_check_branch
          %388 = sbr.rel (%p386) target = $region48
        $region47: #{tpu_custom_call.1} parent=27 // pred_region
          _
        $region48: #{tpu_custom_call.1} parent=27 // pred_fallthru
          _
      $region28: #{tpu_custom_call.1} parent=5 // pred_fallthru
        _
      %p389 = scmp.le.s32.totalorder 2, %s18
      // Predicated region
      $region49: #{tpu_custom_call.1} parent=5 // pred_check
        %p390 = pneg %p389
      $region50: #{tpu_custom_call.1} parent=5 // pred_check_branch
        %392 = sbr.rel (%p390) target = $region52
      $region51: #{tpu_custom_call.1} parent=5 // pred_region
        %s393 = ssub.s32 %s18, 2
        // Predicated region
        $region53: #{tpu_custom_call.1} parent=51 // pred_check
          %p394 = pneg %p94
        $region54: #{tpu_custom_call.1} parent=51 // pred_check_branch
          %396 = sbr.rel (%p394) target = $region56
        $region55: #{tpu_custom_call.1} parent=51 // pred_region
          %s397 = sand.u32 %s79, 1
          %s398 = scalar_lea.sflag [#allocation4], %s397
          %s399 = sand.u32 %s79, 1
          %s400 = smul.addr %s399, 8
          %s401 = scalar_lea.vmem [#allocation7], %s400
          %402 = dma.done %s398, 128
        $region56: #{tpu_custom_call.1} parent=51 // pred_fallthru
          _
        // Predicated region
        $region57: #{tpu_custom_call.1} parent=51 // pred_check
          %p403 = pneg %p120
        $region58: #{tpu_custom_call.1} parent=51 // pred_check_branch
          %405 = sbr.rel (%p403) target = $region60
        $region59: #{tpu_custom_call.1} parent=51 // pred_region
          %p406 = scmp.lt.s32.totalorder %s24, 1
          %s407 = scalar_select %p406, %s24, 1
          %s408 = smul.addr %s407, 8
          %s409 = scalar_lea.vmem %s3, %s408
        $region60: #{tpu_custom_call.1} parent=51 // pred_fallthru
          _
        // Predicated region
        $region61: #{tpu_custom_call.1} parent=51 // pred_check
          %p410 = pneg %p146
        $region62: #{tpu_custom_call.1} parent=51 // pred_check_branch
          %412 = sbr.rel (%p410) target = $region64
        $region63: #{tpu_custom_call.1} parent=51 // pred_region
          %p413 = scmp.lt.s32.totalorder %s24, 1
          %s414 = scalar_select %p413, %s24, 1
          %s415 = smul.addr %s414, 8
          %s416 = scalar_lea.vmem %s4, %s415
        $region64: #{tpu_custom_call.1} parent=51 // pred_fallthru
          _
      $region52: #{tpu_custom_call.1} parent=5 // pred_fallthru
        _
    $region6: #{tpu_custom_call.1} parent=1 // loop_footer
      %s22 = sadd.s32 1, %s18
    $region7: #{tpu_custom_call.1} parent=1 // loop_footer_branch
      %17 = sbr.rel target = $region3
    $region8: #{tpu_custom_call.1} parent=1 // loop_exit
      _
    %417 = vsyncpa [#allocation3], 1
    %s418 = scalar_lea.sflag [#allocation3], 1
    %419 = vsyncpa %s418, 1
    %420 = vsyncpa [#allocation6], 1
    %s421 = scalar_lea.sflag [#allocation6], 1
    %422 = vsyncpa %s421, 1
    %423 = vsyncpa [#allocation4], 1
    %s424 = scalar_lea.sflag [#allocation4], 1
    %425 = vsyncpa %s424, 1

</llo_original>
